<compile_context>
chip_gen: v6e
topology: v6e:2x2x1
jax: 0.10.0
libtpu: 0.0.40
codegen_flags: <defaults>
</compile_context>

<pallas_src>
import jax
import jax.numpy as jnp
from jax.experimental import pallas as pl
from jax.experimental.pallas import tpu as pltpu

_LANES = 128
# 8192 rows * 128 lanes * 4 B = 4 MiB per f32 block.  Double-buffered input +
# output => ~16 MiB resident, which fits the 32 MiB scoped-VMEM default on
# v5e/v6e/v7x while keeping the ~0.35 us/step grid overhead well under 5%.
_BLOCK_ROWS = 8192


def _double_kernel(x_ref, o_ref):
    # Plain VPU elementwise add in f32 (memory-bound; no compute tricks).
    o_ref[...] = x_ref[...] + x_ref[...]


def _double_tiled(x2):
    """x2 is (rows, 128) f32-like; returns x2 + x2 via a pipelined 1-D grid."""
    rows, lanes = x2.shape
    block_rows = min(rows, _BLOCK_ROWS)  # full-extent block when rows is small
    grid = (pl.cdiv(rows, block_rows),)
    return pl.pallas_call(
        _double_kernel,
        out_shape=jax.ShapeDtypeStruct(x2.shape, x2.dtype),
        grid=grid,
        in_specs=[pl.BlockSpec((block_rows, lanes), lambda i: (i, 0))],
        out_specs=pl.BlockSpec((block_rows, lanes), lambda i: (i, 0)),
        compiler_params=pltpu.CompilerParams(
            dimension_semantics=("parallel",)),
    )(x2)


def _double_whole(x):
    """Fallback for sizes not divisible by 128: one whole-array block
    (block_shape == array shape is exempt from the (8,128) rule)."""
    return pl.pallas_call(
        _double_kernel,
        out_shape=jax.ShapeDtypeStruct(x.shape, x.dtype),
        grid=(1,),
        in_specs=[pl.BlockSpec(x.shape, lambda i: (0,) * x.ndim)],
        out_specs=pl.BlockSpec(x.shape, lambda i: (0,) * x.ndim),
    )(x)


def _double(x):
    n = x.size
    if n > 0 and n % _LANES == 0:
        rows = n // _LANES
        y2 = _double_tiled(x.reshape(rows, _LANES))
        return y2.reshape(x.shape)
    # Lane-sparse tiny/odd-sized tensors: single whole-array block.
    return _double_whole(x)


@jax.jit
def fp32_model_forward(x):
    """JAX/Pallas equivalent of FP32Model.forward (NCHW input)."""
    times = x.shape[1]  # static shape -> Python-level branch, like x.size(1)
    if times == 1:
        return _double(x)
    # Identity branch: no kernel, no copy -- just return the input.
    return x


if __name__ == "__main__":
    key = jax.random.PRNGKey(0)
    k1, k2, k3 = jax.random.split(key, 3)

    # Case 1: channel dim == 1 -> returns x + x (lane-dense single block).
    x1 = jax.random.normal(k1, (2, 1, 16, 16), dtype=jnp.float32)
    y1 = jax.block_until_ready(fp32_model_forward(x1))
    assert y1.shape == x1.shape and y1.dtype == x1.dtype
    assert jnp.allclose(y1, x1 + x1)

    # Case 2: channel dim != 1 -> returns x unchanged (no kernel launch).
    x2 = jax.random.normal(k2, (2, 4, 16, 16), dtype=jnp.float32)
    y2 = jax.block_until_ready(fp32_model_forward(x2))
    assert y2.shape == x2.shape and y2.dtype == x2.dtype
    assert jnp.allclose(y2, x2)

    # Case 3: larger channel-1 input to exercise the multi-block pipelined
    # path (16384 rows -> grid=(2,), 4 MiB blocks).
    x3 = jax.random.normal(k3, (2, 1, 1024, 1024), dtype=jnp.float32)
    y3 = jax.block_until_ready(fp32_model_forward(x3))
    assert y3.shape == x3.shape and y3.dtype == x3.dtype
    assert jnp.allclose(y3, x3 + x3)

    print("KERNEL_OK")
</pallas_src>

<mosaic_0001>
module attributes {stable_mosaic.version = 11 : i64} {
  func.func @_double_kernel(%arg0: i32, %arg1: memref<4x128xf32, #tpu.memory_space<vmem>>, %arg2: memref<4x128xf32, #tpu.memory_space<vmem>>) attributes {dimension_semantics = [#tpu.dimension_semantics<parallel>], iteration_bounds = array<i64: 1>, scalar_prefetch = 0 : i64, scratch_operands = 0 : i64, tpu.core_type = #tpu.core_type<tc>, window_params = [{transform_indices = @transform_0, window_bounds = array<i64: 4, 128>}, {transform_indices = @transform_1, window_bounds = array<i64: 4, 128>}]} {
    %c0 = arith.constant 0 : index
    %c0_0 = arith.constant 0 : index
    %0 = vector.load %arg1[%c0, %c0_0] : memref<4x128xf32, #tpu.memory_space<vmem>>, vector<4x128xf32>
    %c0_1 = arith.constant 0 : index
    %c0_2 = arith.constant 0 : index
    %1 = vector.load %arg1[%c0_1, %c0_2] : memref<4x128xf32, #tpu.memory_space<vmem>>, vector<4x128xf32>
    %2 = arith.addf %0, %1 : vector<4x128xf32>
    %c0_3 = arith.constant 0 : index
    %c0_4 = arith.constant 0 : index
    %3 = vector.load %arg2[%c0_3, %c0_4] : memref<4x128xf32, #tpu.memory_space<vmem>>, vector<4x128xf32>
    tpu.vector_store %arg2[%c0_3, %c0_4], %2 {strides = array<i32>} : memref<4x128xf32, #tpu.memory_space<vmem>>, vector<4x128xf32>,
    return
  }
  func.func @transform_0(%arg0: i32) -> (i32, i32) {
    %c0_i32 = arith.constant 0 : i32
    %c0_i32_0 = arith.constant 0 : i32
    return %arg0, %c0_i32 : i32, i32
  }
  func.func @transform_1(%arg0: i32) -> (i32, i32) {
    %c0_i32 = arith.constant 0 : i32
    %c0_i32_0 = arith.constant 0 : i32
    return %arg0, %c0_i32 : i32, i32
  }
}

</mosaic_0001>

<llo_original>
// kernel: fp32_model_forward.1
$region0: #{fp32_model_forward.1}
  #allocation0 [shape = 'u32[]', space=smem, size = 0x4, offset = 0x4, fixed_abs, tag = 'smem constant byte address 0x4 - core index']
  #allocation1 [shape = 'u32[144,128]{1,0:T(1,128)}', space=vmem, size = 0x12000, scoped, tag = 'internal scratch']
  %s0 = inlined_call_operand.vmem [shape: f32[4,128], index: 0, kind: input, shape index: {}]
  %s1 = inlined_call_operand.vmem [shape: f32[4,128], index: 1, kind: output, shape index: {}]
  %s2 = sld [smem:[#allocation0]]
  $region14: #{fp32_model_forward.1} parent=0
    _
  %s4 = ssub.s32 1, %s2
  %s5 = scalar_select 0, %s4, %s2
  // Predicated region
  $region2: #{fp32_model_forward.1} parent=0 // pred_check
    _
  $region3: #{fp32_model_forward.1} parent=0 // pred_check_branch
    %7 = sbr.rel (0) target = $region5
  $region4: #{fp32_model_forward.1} parent=0 // pred_region
    _
  $region5: #{fp32_model_forward.1} parent=0 // pred_fallthru
    _
  %v8 = vld [vmem:[%s0] sm:$0xf]
  %v9 = vadd.f32 %v8, %v8
  %10 = vst [vmem:[%s1] sm:$0xf] %v9
  // Predicated region
  $region6: #{fp32_model_forward.1} parent=0 // pred_check
    _
  $region7: #{fp32_model_forward.1} parent=0 // pred_check_branch
    %12 = sbr.rel (0) target = $region9
  $region8: #{fp32_model_forward.1} parent=0 // pred_region
    _
  $region9: #{fp32_model_forward.1} parent=0 // pred_fallthru
    _
  // Predicated region
  $region10: #{fp32_model_forward.1} parent=0 // pred_check
    _
  $region11: #{fp32_model_forward.1} parent=0 // pred_check_branch
    %14 = sbr.rel (0) target = $region13
  $region12: #{fp32_model_forward.1} parent=0 // pred_region
    _
  $region13: #{fp32_model_forward.1} parent=0 // pred_fallthru
    _

</llo_original>
